<compile_context>
chip_gen: v7x
topology: tpu7x:2x2x1
jax: 0.10.0
libtpu: 0.0.40
codegen_flags: <defaults>
</compile_context>

<pallas_src>
import functools
import math

import jax
import jax.numpy as jnp
import numpy as np
from jax.experimental import pallas as pl
from jax.experimental.pallas import tpu as pltpu

LANE = 128
SUBLANE = 8
MAX_TILE_S = 2048  # 2048*128*4B = 1 MiB per f32 buffer


def _round_up(n: int, m: int) -> int:
    return ((n + m - 1) // m) * m


def _mixup_x_kernel(perm_ref, coef_ref, xi_ref, xp_ref, xo_ref):
    """One (1, TILE_S, 128) tile:  out = c * x[b] + (1 - c) * x[perm[b]].

    perm_ref / coef_ref: scalar-prefetch SMEM refs (B,).
    xi_ref:  identity-indexed tile of X.
    xp_ref:  perm-indexed tile of X (gather done by the DMA pipeline).
    """
    b = pl.program_id(0)
    c = coef_ref[b]                                   # f32 scalar from SMEM
    xi = xi_ref[...].astype(jnp.float32)
    xp = xp_ref[...].astype(jnp.float32)
    xo_ref[...] = (c * xi + (1.0 - c) * xp).astype(xo_ref.dtype)


@functools.partial(jax.jit, static_argnames=("mixadd",))
def mixup_pallas(x, y, perm, coeffs, mixadd: bool = False, z=None):
    """Pallas implementation of Mixup.forward.

    x: (B, ...) float array, y: (B, L) float array,
    perm: (B,) int permutation, coeffs: (B,) Beta samples.
    """
    B = x.shape[0]
    orig_shape = x.shape
    F = int(np.prod(x.shape[1:]))

    # Lane-dense 3-D view: (B, S_pad, 128), S_pad a multiple of the tile size.
    S = _round_up(F, LANE) // LANE
    tile_s = min(MAX_TILE_S, _round_up(S, SUBLANE))
    S_pad = _round_up(S, tile_s)
    F_pad = S_pad * LANE

    x_flat = x.reshape(B, F)
    if F_pad != F:
        x_flat = jnp.pad(x_flat, ((0, 0), (0, F_pad - F)))
    x3 = x_flat.reshape(B, S_pad, LANE)

    perm_i32 = perm.astype(jnp.int32)
    coeffs_f32 = coeffs.astype(jnp.float32)   # keep coefficients in f32

    grid = (B, S_pad // tile_s)
    itemsize = jnp.dtype(x.dtype).itemsize

    out_x3 = pl.pallas_call(
        _mixup_x_kernel,
        out_shape=jax.ShapeDtypeStruct((B, S_pad, LANE), x.dtype),
        grid_spec=pltpu.PrefetchScalarGridSpec(
            num_scalar_prefetch=2,
            grid=grid,
            in_specs=[
                # identity row
                pl.BlockSpec((1, tile_s, LANE),
                             lambda b, f, perm, coef: (b, f, 0)),
                # permuted row: gather expressed in the index_map -> DMA gather
                pl.BlockSpec((1, tile_s, LANE),
                             lambda b, f, perm, coef: (perm[b], f, 0)),
            ],
            out_specs=pl.BlockSpec((1, tile_s, LANE),
                                   lambda b, f, perm, coef: (b, f, 0)),
        ),
        compiler_params=pltpu.CompilerParams(
            dimension_semantics=("parallel", "arbitrary")),
        cost_estimate=pl.CostEstimate(
            flops=3 * B * F_pad,
            transcendentals=0,
            bytes_accessed=3 * B * F_pad * itemsize),
    )(perm_i32, coeffs_f32, x3, x3)

    out_x = out_x3.reshape(B, F_pad)[:, :F].reshape(orig_shape)

    # Label mixing: tiny (B, num_classes); left to XLA per perf review
    # (lane-sparse masked stores in-kernel would cost more than they save).
    y_f32 = y.astype(jnp.float32)
    y_perm = y_f32[perm_i32]
    if mixadd:
        out_y = jnp.clip(y_f32 + y_perm, 0.0, 1.0).astype(y.dtype)
    else:
        c_y = coeffs_f32.reshape(-1, 1)
        out_y = (c_y * y_f32 + (1.0 - c_y) * y_perm).astype(y.dtype)

    if z is not None:
        return out_x, out_y, z
    return out_x, out_y


def _reference(x, y, perm, coeffs, mixadd):
    n_dims = x.ndim
    c_x = coeffs.reshape((-1,) + (1,) * (n_dims - 1))
    rx = c_x * x + (1.0 - c_x) * x[perm]
    if mixadd:
        ry = jnp.clip(y + y[perm], 0.0, 1.0)
    else:
        c_y = coeffs.reshape(-1, 1)
        ry = c_y * y + (1.0 - c_y) * y[perm]
    return rx, ry


if __name__ == "__main__":
    # Small shapes consistent with the module's forward.
    B, C, H, W = 2, 4, 16, 16
    NUM_CLASSES = 8
    MIX_BETA = 0.5

    key = jax.random.PRNGKey(0)
    kx, ky, kperm, kbeta = jax.random.split(key, 4)

    x = jax.random.normal(kx, (B, C, H, W), dtype=jnp.float32)
    y = jax.random.uniform(ky, (B, NUM_CLASSES), dtype=jnp.float32)

    # The module's randomness (randperm + Beta rsample) is generated as glue.
    # TODO(synk): torch Beta.rsample / randperm have no in-kernel equivalent;
    # they are produced with jax.random outside the kernel.
    perm = jax.random.permutation(kperm, B).astype(jnp.int32)
    coeffs = jax.random.beta(kbeta, MIX_BETA, MIX_BETA, (B,)).astype(jnp.float32)

    # mixadd=False branch (default)
    out_x, out_y = mixup_pallas(x, y, perm, coeffs, mixadd=False)
    jax.block_until_ready((out_x, out_y))
    ref_x, ref_y = _reference(x, y, perm, coeffs, mixadd=False)
    np.testing.assert_allclose(np.asarray(out_x), np.asarray(ref_x), rtol=1e-5, atol=1e-5)
    np.testing.assert_allclose(np.asarray(out_y), np.asarray(ref_y), rtol=1e-5, atol=1e-5)

    # mixadd=True branch
    out_x2, out_y2 = mixup_pallas(x, y, perm, coeffs, mixadd=True)
    jax.block_until_ready((out_x2, out_y2))
    ref_x2, ref_y2 = _reference(x, y, perm, coeffs, mixadd=True)
    np.testing.assert_allclose(np.asarray(out_x2), np.asarray(ref_x2), rtol=1e-5, atol=1e-5)
    np.testing.assert_allclose(np.asarray(out_y2), np.asarray(ref_y2), rtol=1e-5, atol=1e-5)

    # Z pass-through
    z = jnp.arange(B, dtype=jnp.float32)
    out3 = mixup_pallas(x, y, perm, coeffs, mixadd=False, z=z)
    jax.block_until_ready(out3)
    assert len(out3) == 3

    print("KERNEL_OK")
</pallas_src>

<mosaic_0001>
module attributes {stable_mosaic.version = 11 : i64} {
  func.func @_mixup_x_kernel(%arg0: i32, %arg1: i32, %arg2: memref<2xi32, #tpu.memory_space<smem>>, %arg3: memref<2xf32, #tpu.memory_space<smem>>, %arg4: memref<1x8x128xf32, #tpu.memory_space<vmem>>, %arg5: memref<1x8x128xf32, #tpu.memory_space<vmem>>, %arg6: memref<1x8x128xf32, #tpu.memory_space<vmem>>) attributes {dimension_semantics = [#tpu.dimension_semantics<parallel>, #tpu.dimension_semantics<arbitrary>], iteration_bounds = array<i64: 2, 1>, scalar_prefetch = 2 : i64, scratch_operands = 0 : i64, tpu.core_type = #tpu.core_type<tc>, window_params = [{transform_indices = @transform_0, window_bounds = array<i64: 1, 8, 128>}, {transform_indices = @transform_1, window_bounds = array<i64: 1, 8, 128>}, {transform_indices = @transform_2, window_bounds = array<i64: 1, 8, 128>}]} {
    %0 = arith.index_cast %arg0 : i32 to index
    %1 = memref.load %arg3[%0] : memref<2xf32, #tpu.memory_space<smem>>
    %c0 = arith.constant 0 : index
    %c0_0 = arith.constant 0 : index
    %c0_1 = arith.constant 0 : index
    %2 = vector.load %arg4[%c0, %c0_0, %c0_1] : memref<1x8x128xf32, #tpu.memory_space<vmem>>, vector<1x8x128xf32>
    %c0_2 = arith.constant 0 : index
    %c0_3 = arith.constant 0 : index
    %c0_4 = arith.constant 0 : index
    %3 = vector.load %arg5[%c0_2, %c0_3, %c0_4] : memref<1x8x128xf32, #tpu.memory_space<vmem>>, vector<1x8x128xf32>
    %4 = vector.broadcast %1 : f32 to vector<1x8x128xf32>
    %5 = arith.mulf %4, %2 : vector<1x8x128xf32>
    %cst = arith.constant 1.000000e+00 : f32
    %6 = arith.subf %cst, %1 : f32
    %7 = vector.broadcast %6 : f32 to vector<1x8x128xf32>
    %8 = arith.mulf %7, %3 : vector<1x8x128xf32>
    %9 = arith.addf %5, %8 : vector<1x8x128xf32>
    %c0_5 = arith.constant 0 : index
    %c0_6 = arith.constant 0 : index
    %c0_7 = arith.constant 0 : index
    %10 = vector.load %arg6[%c0_5, %c0_6, %c0_7] : memref<1x8x128xf32, #tpu.memory_space<vmem>>, vector<1x8x128xf32>
    tpu.vector_store %arg6[%c0_5, %c0_6, %c0_7], %9 {strides = array<i32>} : memref<1x8x128xf32, #tpu.memory_space<vmem>>, vector<1x8x128xf32>,
    return
  }
  func.func @transform_0(%arg0: i32, %arg1: i32, %arg2: memref<2xi32, #tpu.memory_space<smem>>, %arg3: memref<2xf32, #tpu.memory_space<smem>>) -> (i32, i32, i32) {
    %c0_i32 = arith.constant 0 : i32
    %c0_i32_0 = arith.constant 0 : i32
    return %arg0, %arg1, %c0_i32 : i32, i32, i32
  }
  func.func @transform_1(%arg0: i32, %arg1: i32, %arg2: memref<2xi32, #tpu.memory_space<smem>>, %arg3: memref<2xf32, #tpu.memory_space<smem>>) -> (i32, i32, i32) {
    %0 = arith.index_cast %arg0 : i32 to index
    %1 = memref.load %arg2[%0] : memref<2xi32, #tpu.memory_space<smem>>
    %c0_i32 = arith.constant 0 : i32
    %c0_i32_0 = arith.constant 0 : i32
    return %1, %arg1, %c0_i32 : i32, i32, i32
  }
  func.func @transform_2(%arg0: i32, %arg1: i32, %arg2: memref<2xi32, #tpu.memory_space<smem>>, %arg3: memref<2xf32, #tpu.memory_space<smem>>) -> (i32, i32, i32) {
    %c0_i32 = arith.constant 0 : i32
    %c0_i32_0 = arith.constant 0 : i32
    return %arg0, %arg1, %c0_i32 : i32, i32, i32
  }
}

</mosaic_0001>

<llo_original>
// kernel: mixup_pallas.1
$region0: #{mixup_pallas.1}
  #allocation0 [shape = 'u32[]', space=smem, size = 0x4, offset = 0x4, fixed_abs, tag = 'smem constant byte address 0x4 - core index']
  #allocation1 [shape = 'u32[144,128]{1,0:T(1,128)}', space=vmem, size = 0x12000, scoped, tag = 'internal scratch']
  #allocation2 [shape = 's32[1]{0}', space=sflag, size = 0x4, scoped, tag = 'scoped memory for mixup_pallas.1']
  #allocation3 [shape = 'u8[512]{0}', space=smem, size = 0x200, scoped, tag = 'prefetched SMEM operand 0']
  #allocation4 [shape = 'u8[512]{0}', space=smem, size = 0x200, scoped, tag = 'prefetched SMEM operand 1']
  %s0 = inlined_call_operand.vmem [shape: s32[2], index: 0, kind: input, shape index: {}]
  %s1 = inlined_call_operand.vmem [shape: f32[2], index: 1, kind: input, shape index: {}]
  %s2 = inlined_call_operand.vmem [shape: f32[2,8,128], index: 2, kind: input, shape index: {}, may-alias: {2,3}]
  %s3 = inlined_call_operand.vmem [shape: f32[2,8,128], index: 3, kind: input, shape index: {}, may-alias: {2,3}]
  %s4 = inlined_call_operand.vmem [shape: f32[2,8,128], index: 4, kind: output, shape index: {}]
  %s5 = sld [smem:[#allocation0]]
  $region41: #{mixup_pallas.1} parent=0
    _
  %s7 = ssub.s32 1, %s5
  %s8 = scalar_select 0, %s7, %s5
  %s9 = sshll.u32 %s0, 4
  %s10 = int_to_ptr.vmem [resolvable:$true] %s9
  %12 = dma.vmem_to_smem %s10, 16, [#allocation3], [#allocation2]
  %s13 = sshll.u32 %s1, 4
  %s14 = int_to_ptr.vmem [resolvable:$true] %s13
  %16 = dma.vmem_to_smem %s14, 16, [#allocation4], [#allocation2]
  %17 = dma.done [#allocation2], 32
  %18 = sfence
  loop: start=0, step=1, limit=4
  $region2: #{mixup_pallas.1} parent=0 // loop_pre_header
    _
  $region3: #{mixup_pallas.1} parent=0 // loop_header
    %s20 = sphi 0, %s24
    %p21 = scmp.ge.s32.totalorder %s20, 4
    %s27 = sphi 0, %s39
    %s28 = sphi 0, %s35
    %s29 = sphi 0, %s27
    %s30 = sphi 0, %s28
    %s31 = sphi 0, %s29
    %s32 = sphi 0, %s30
    %s44 = sphi 0, %s46
    %s47 = sphi 0, %s44
    %s48 = sphi 0, %s47
    %s64 = sphi 0, %s48
    %s74 = sphi 0, %s76
    %s77 = sphi 0, %s74
    %s78 = sphi 0, %s77
    %s94 = sphi 0, %s78
    %s102 = sphi 0, %s104
    %s105 = sphi 0, %s102
    %s106 = sphi 0, %s105
    %s122 = sphi 0, %s106
  $region4: #{mixup_pallas.1} parent=0 // loop_header_branch
    %23 = sbr.rel (%p21) target = $region8
  $region5: #{mixup_pallas.1} parent=0 // loop_body
    %s25 = ssub.s32 %s20, 1
    %s26 = ssub.s32 %s20, 2
    %s33 = sadd.s32 1, %s28
    %p34 = scmp.ge.s32.totalorder %s33, 1
    %s35 = scalar_select %p34, 0, %s33
    %s36 = sadd.s32 1, %s27
    %s37 = scalar_select %p34, %s36, %s27
    %p38 = scmp.ge.s32.totalorder %s37, 2
    %s39 = scalar_select %p38, 0, %s37
    %s40 = ssub.s32 %s27, %s39
    %s41 = ssub.s32 %s28, %s35
    %s42 = sor.u32 %s40, %s41
    %p43 = scmp.eq.s32.totalorder %s42, 0
    %s45 = sadd.s32 %s44, 1
    %s46 = scalar_select %p43, %s44, %s45
    %p49 = pneg %p43
    %p50 = scmp.eq.s32.totalorder %s20, 1
    %p51 = por %p49, %p50
    %p52 = scmp.ne.s32.totalorder %s44, %s47
    %p53 = scmp.eq.s32.totalorder %s20, 0
    %p54 = por %p52, %p53
    %p55 = scmp.ne.s32.totalorder %s44, %s47
    %p56 = scmp.eq.s32.totalorder %s25, 1
    %p57 = por %p55, %p56
    %p58 = scmp.ne.s32.totalorder %s47, %s48
    %p59 = scmp.eq.s32.totalorder %s25, 0
    %p60 = por %p58, %p59
    %p61 = scmp.ne.s32.totalorder %s47, %s48
    %p62 = scmp.eq.s32.totalorder %s26, 1
    %p63 = por %p61, %p62
    %p65 = scmp.ne.s32.totalorder %s48, %s64
    %p66 = scmp.eq.s32.totalorder %s26, 0
    %p67 = por %p65, %p66
    %s68 = sld [smem:[#allocation3 + %s27]]
    %s69 = sld [smem:[#allocation3 + %s39]]
    %s70 = ssub.s32 %s68, %s69
    %s71 = ssub.s32 %s28, %s35
    %s72 = sor.u32 %s70, %s71
    %p73 = scmp.eq.s32.totalorder %s72, 0
    %s75 = sadd.s32 %s74, 1
    %s76 = scalar_select %p73, %s74, %s75
    %p79 = pneg %p73
    %p80 = scmp.eq.s32.totalorder %s20, 1
    %p81 = por %p79, %p80
    %p82 = scmp.ne.s32.totalorder %s74, %s77
    %p83 = scmp.eq.s32.totalorder %s20, 0
    %p84 = por %p82, %p83
    %p85 = scmp.ne.s32.totalorder %s74, %s77
    %p86 = scmp.eq.s32.totalorder %s25, 1
    %p87 = por %p85, %p86
    %p88 = scmp.ne.s32.totalorder %s77, %s78
    %p89 = scmp.eq.s32.totalorder %s25, 0
    %p90 = por %p88, %p89
    %p91 = scmp.ne.s32.totalorder %s77, %s78
    %p92 = scmp.eq.s32.totalorder %s26, 1
    %p93 = por %p91, %p92
    %p95 = scmp.ne.s32.totalorder %s78, %s94
    %p96 = scmp.eq.s32.totalorder %s26, 0
    %p97 = por %p95, %p96
    %s98 = ssub.s32 %s27, %s39
    %s99 = ssub.s32 %s28, %s35
    %s100 = sor.u32 %s98, %s99
    %p101 = scmp.eq.s32.totalorder %s100, 0
    %s103 = sadd.s32 %s102, 1
    %s104 = scalar_select %p101, %s102, %s103
    %p107 = pneg %p101
    %p108 = scmp.eq.s32.totalorder %s20, 1
    %p109 = por %p107, %p108
    %p110 = scmp.ne.s32.totalorder %s102, %s105
    %p111 = scmp.eq.s32.totalorder %s20, 0
    %p112 = por %p110, %p111
    %p113 = scmp.ne.s32.totalorder %s102, %s105
    %p114 = scmp.eq.s32.totalorder %s25, 1
    %p115 = por %p113, %p114
    %p116 = scmp.ne.s32.totalorder %s105, %s106
    %p117 = scmp.eq.s32.totalorder %s25, 0
    %p118 = por %p116, %p117
    %p119 = scmp.ne.s32.totalorder %s105, %s106
    %p120 = scmp.eq.s32.totalorder %s26, 1
    %p121 = por %p119, %p120
    %p123 = scmp.ne.s32.totalorder %s106, %s122
    %p124 = scmp.eq.s32.totalorder %s26, 0
    %p125 = por %p123, %p124
    %p126 = scmp.le.s32.totalorder 1, %s20
    %p127 = scmp.lt.s32.totalorder %s20, 3
    %p128 = pnand %p126, %p127
    %p129 = pneg %p128
    // Predicated region
    $region9: #{mixup_pallas.1} parent=5 // pred_check
      _
    $region10: #{mixup_pallas.1} parent=5 // pred_check_branch
      %131 = sbr.rel (%p128) target = $region12
    $region11: #{mixup_pallas.1} parent=5 // pred_region
      %s132 = ssub.s32 %s20, 1
    $region12: #{mixup_pallas.1} parent=5 // pred_fallthru
      _
    %p133 = scmp.lt.s32.totalorder %s20, 2
    // Predicated region
    $region13: #{mixup_pallas.1} parent=5 // pred_check
      %p134 = pneg %p133
    $region14: #{mixup_pallas.1} parent=5 // pred_check_branch
      %136 = sbr.rel (%p134) target = $region16
    $region15: #{mixup_pallas.1} parent=5 // pred_region
      // Predicated region
      $region17: #{mixup_pallas.1} parent=15 // pred_check
        %p137 = pneg %p54
      $region18: #{mixup_pallas.1} parent=15 // pred_check_branch
        %139 = sbr.rel (%p137) target = $region20
      $region19: #{mixup_pallas.1} parent=15 // pred_region
        %p140 = scmp.lt.s32.totalorder %s27, 1
        %s141 = scalar_select %p140, %s27, 1
        %p142 = scmp.lt.s32.totalorder %s28, 0
        %s143 = scalar_select %p142, %s28, 0
        %s144 = sadd.s32 %s143, %s141
        %s145 = smul.addr %s144, 8
        %s146 = scalar_lea.vmem %s2, %s145
      $region20: #{mixup_pallas.1} parent=15 // pred_fallthru
        _
      // Predicated region
      $region21: #{mixup_pallas.1} parent=15 // pred_check
        %p147 = pneg %p84
      $region22: #{mixup_pallas.1} parent=15 // pred_check_branch
        %149 = sbr.rel (%p147) target = $region24
      $region23: #{mixup_pallas.1} parent=15 // pred_region
        %s150 = sld [smem:[#allocation3 + %s27]]
        %p151 = scmp.lt.s32.totalorder %s150, 1
        %s152 = scalar_select %p151, %s150, 1
        %p153 = scmp.lt.s32.totalorder %s28, 0
        %s154 = scalar_select %p153, %s28, 0
        %s155 = sadd.s32 %s154, %s152
        %s156 = smul.addr %s155, 8
        %s157 = scalar_lea.vmem %s3, %s156
        %s158 = sld [smem:[#allocation3 + %s27]]
      $region24: #{mixup_pallas.1} parent=15 // pred_fallthru
        _
    $region16: #{mixup_pallas.1} parent=5 // pred_fallthru
      _
    %p159 = scmp.le.s32.totalorder 1, %s20
    %p160 = scmp.lt.s32.totalorder %s20, 3
    %p161 = pnand %p159, %p160
    %p162 = pneg %p161
    // Predicated region
    $region25: #{mixup_pallas.1} parent=5 // pred_check
      _
    $region26: #{mixup_pallas.1} parent=5 // pred_check_branch
      %164 = sbr.rel (%p161) target = $region28
    $region27: #{mixup_pallas.1} parent=5 // pred_region
      %s165 = ssub.s32 %s20, 1
      %p166 = scmp.lt.s32.totalorder %s29, 1
      %s167 = scalar_select %p166, %s29, 1
      %p168 = scmp.lt.s32.totalorder %s30, 0
      %s169 = scalar_select %p168, %s30, 0
      %s170 = sadd.s32 %s169, %s167
      %s171 = smul.addr %s170, 8
      %s172 = scalar_lea.vmem %s2, %s171
      %p173 = pneg %p60
      %p174 = pneg %p57
      %s175 = sld [smem:[#allocation3 + %s29]]
      %p176 = scmp.lt.s32.totalorder %s175, 1
      %s177 = scalar_select %p176, %s175, 1
      %p178 = scmp.lt.s32.totalorder %s30, 0
      %s179 = scalar_select %p178, %s30, 0
      %s180 = sadd.s32 %s179, %s177
      %s181 = smul.addr %s180, 8
      %s182 = scalar_lea.vmem %s3, %s181
      %p183 = pneg %p90
      %p184 = pneg %p87
      %p185 = pneg %p118
      %p186 = pneg %p115
      %p187 = scmp.lt.s32.totalorder %s29, 1
      %s188 = scalar_select %p187, %s29, 1
      %p189 = scmp.lt.s32.totalorder %s30, 0
      %s190 = scalar_select %p189, %s30, 0
      %s191 = sadd.s32 %s190, %s188
      %s192 = smul.addr %s191, 8
      %s193 = scalar_lea.vmem %s4, %s192
      %p194 = scmp.lt.s32.totalorder %s29, 1
      %s195 = scalar_select %p194, %s29, 1
      %p196 = scmp.lt.s32.totalorder %s30, 0
      %s197 = scalar_select %p196, %s30, 0
      %s198 = sadd.s32 %s197, %s195
      %s199 = smul.addr %s198, 8
      %s200 = scalar_lea.vmem %s2, %s199
      %s201 = sld [smem:[#allocation3 + %s29]]
      %p202 = scmp.lt.s32.totalorder %s201, 1
      %s203 = scalar_select %p202, %s201, 1
      %p204 = scmp.lt.s32.totalorder %s30, 0
      %s205 = scalar_select %p204, %s30, 0
      %s206 = sadd.s32 %s205, %s203
      %s207 = smul.addr %s206, 8
      %s208 = scalar_lea.vmem %s3, %s207
      %s209 = sld [smem:[#allocation3 + %s29]]
      %p210 = scmp.lt.s32.totalorder %s29, 1
      %s211 = scalar_select %p210, %s29, 1
      %p212 = scmp.lt.s32.totalorder %s30, 0
      %s213 = scalar_select %p212, %s30, 0
      %s214 = sadd.s32 %s213, %s211
      %s215 = smul.addr %s214, 8
      %s216 = scalar_lea.vmem %s4, %s215
      %s217 = sld [smem:[#allocation4 + %s29]]
      %v218 = vld [vmem:[%s200] sm:$0xff]
      %v219 = vld [vmem:[%s208] sm:$0xff]
      %v220 = vstv %s217
      %v221 = vmul.f32 %v220, %v218
      %s222 = ssub.f32 1.0, %s217
      %v223 = vstv %s222
      %v224 = vmul.f32 %v223, %v219
      %v225 = vadd.f32 %v221, %v224
      %226 = vst [vmem:[%s216] sm:$0xff] %v225
      %p227 = scmp.lt.s32.totalorder %s29, 1
      %s228 = scalar_select %p227, %s29, 1
      %p229 = scmp.lt.s32.totalorder %s30, 0
      %s230 = scalar_select %p229, %s30, 0
      %s231 = sadd.s32 %s230, %s228
      %s232 = smul.addr %s231, 8
      %s233 = scalar_lea.vmem %s4, %s232
      // Predicated region
      $region29: #{mixup_pallas.1} parent=27 // pred_check
        %p234 = pneg %p115
      $region30: #{mixup_pallas.1} parent=27 // pred_check_branch
        %236 = sbr.rel (%p234) target = $region32
      $region31: #{mixup_pallas.1} parent=27 // pred_region
        _
      $region32: #{mixup_pallas.1} parent=27 // pred_fallthru
        _
    $region28: #{mixup_pallas.1} parent=5 // pred_fallthru
      _
    %p237 = scmp.le.s32.totalorder 2, %s20
    // Predicated region
    $region33: #{mixup_pallas.1} parent=5 // pred_check
      %p238 = pneg %p237
    $region34: #{mixup_pallas.1} parent=5 // pred_check_branch
      %240 = sbr.rel (%p238) target = $region36
    $region35: #{mixup_pallas.1} parent=5 // pred_region
      %s241 = ssub.s32 %s20, 2
      // Predicated region
      $region37: #{mixup_pallas.1} parent=35 // pred_check
        %p242 = pneg %p121
      $region38: #{mixup_pallas.1} parent=35 // pred_check_branch
        %244 = sbr.rel (%p242) target = $region40
      $region39: #{mixup_pallas.1} parent=35 // pred_region
        %p245 = scmp.lt.s32.totalorder %s31, 1
        %s246 = scalar_select %p245, %s31, 1
        %p247 = scmp.lt.s32.totalorder %s32, 0
        %s248 = scalar_select %p247, %s32, 0
        %s249 = sadd.s32 %s248, %s246
        %s250 = smul.addr %s249, 8
        %s251 = scalar_lea.vmem %s4, %s250
      $region40: #{mixup_pallas.1} parent=35 // pred_fallthru
        _
    $region36: #{mixup_pallas.1} parent=5 // pred_fallthru
      _
  $region6: #{mixup_pallas.1} parent=0 // loop_footer
    %s24 = sadd.s32 1, %s20
  $region7: #{mixup_pallas.1} parent=0 // loop_footer_branch
    %19 = sbr.rel target = $region3
  $region8: #{mixup_pallas.1} parent=0 // loop_exit
    _

</llo_original>
